<compile_context>
chip_gen: v7x
topology: tpu7x:2x2x1
jax: 0.10.0
libtpu: 0.0.40
codegen_flags: <defaults>
</compile_context>

<pallas_src>
import functools

import jax
import jax.numpy as jnp
from jax import lax
from jax.experimental import pallas as pl
from jax.experimental.pallas import tpu as pltpu


def _round_up(v, m):
    return ((v + m - 1) // m) * m


def _label_smoothing_kernel(x_ref, t_ref, out_ref, *,
                            confidence, smoothing, total_rows):
    i = pl.program_id(0)
    tm, num_classes = x_ref.shape

    x = x_ref[...].astype(jnp.float32)                        # (TM, C)

    # Numerically stable log-sum-exp per row (no full logprobs tensor).
    m = jnp.max(x, axis=-1, keepdims=True)                    # (TM, 1)
    shifted = x - m                                           # (TM, C)
    lse = jnp.log(jnp.sum(jnp.exp(shifted), axis=-1, keepdims=True))  # (TM, 1)

    # Fused gather + mean: a single weighted C-wide reduction.
    #   loss = conf*nll + sm*smooth
    #        = lse - conf*shifted[tgt] - (sm/C)*sum(shifted)
    #        = lse - sum(shifted * w),   w = conf*[c == tgt] + sm/C
    tgt = t_ref[...]                                          # (TM, 1) int32
    col = lax.broadcasted_iota(jnp.int32, (1, num_classes), 1)  # (1, C); broadcasts
    uniform = smoothing / num_classes
    w = jnp.where(col == tgt, confidence + uniform, uniform)    # (TM, C)
    loss = lse - jnp.sum(shifted * w, axis=-1, keepdims=True)   # (TM, 1)

    # Mask rows past N (last block may read out-of-bounds garbage for x).
    # Keep this a true select: NaN/Inf on the discarded branch must not propagate.
    row = i * tm + lax.broadcasted_iota(jnp.int32, loss.shape, 0)
    loss = jnp.where(row < total_rows, loss, 0.0)

    out_ref[...] = loss


def _default_block_budget_bytes():
    """~2-4 MiB f32 working-set block: at the HBM-roofline knee, with large
    VMEM headroom (double-buffered input + several f32 temps live per tile)."""
    try:
        vmem = pltpu.get_tpu_info().vmem_capacity_bytes   # 128 MiB v5e/v6e, 64 MiB v7x
        return int(min(4 * 1024 * 1024, max(2 * 1024 * 1024, vmem // 32)))
    except Exception:
        return 3 * 1024 * 1024


def _pick_row_tile(n_rows, n_cols, itemsize, block_budget_bytes):
    """Largest sublane-aligned row tile (<= 1024) whose *f32* working-set block
    fits the budget.  Budgeting on f32 (not the input itemsize) keeps bf16
    inputs safe: the in-kernel upcast and 'shifted' temporaries are f32."""
    align = 8 if itemsize >= 4 else max(8, 32 // itemsize)   # 8 f32, 16 bf16, 32 int8
    rows = block_budget_bytes // max(1, n_cols * 4)          # f32-based budget
    rows = max(align, min(1024, (rows // align) * align))
    rows = min(rows, _round_up(n_rows, align))               # don't tile past the data
    # Ensure >= 2 grid steps whenever the rows can be split: with
    # dimension_semantics=("parallel",) this lets both v7x TensorCores run.
    if n_rows > align:
        rows = min(rows, _round_up(pl.cdiv(n_rows, 2), align))
    return max(align, rows)


def label_smoothing_loss(x, target, smoothing=0.0, *, row_tile=None):
    """x: (N, C) float logits (f32/bf16); target: (N,) int class indices.

    Returns the scalar label-smoothed NLL loss (mean over rows)."""
    N, C = x.shape
    confidence = 1.0 - smoothing
    itemsize = jnp.dtype(x.dtype).itemsize

    if row_tile is None:
        row_tile = _pick_row_tile(N, C, itemsize, _default_block_budget_bytes())
    num_tiles = pl.cdiv(N, row_tile)
    n_pad = num_tiles * row_tile

    # Targets are tiny; pad them so the last block never reads stale VMEM.
    tgt2d = target.astype(jnp.int32).reshape(N, 1)
    if n_pad != N:
        tgt2d = jnp.pad(tgt2d, ((0, n_pad - N), (0, 0)))

    kernel = functools.partial(
        _label_smoothing_kernel,
        confidence=float(confidence),
        smoothing=float(smoothing),
        total_rows=N,
    )

    cost = pl.CostEstimate(
        flops=7 * N * C,
        transcendentals=N * C,              # one exp per element
        bytes_accessed=N * C * itemsize + n_pad * 4 + n_pad * 4,
    )

    per_row = pl.pallas_call(
        kernel,
        out_shape=jax.ShapeDtypeStruct((n_pad, 1), jnp.float32),
        grid_spec=pltpu.PrefetchScalarGridSpec(
            num_scalar_prefetch=0,
            grid=(num_tiles,),
            in_specs=[
                pl.BlockSpec((row_tile, C), lambda i: (i, 0)),
                pl.BlockSpec((row_tile, 1), lambda i: (i, 0)),
            ],
            out_specs=pl.BlockSpec((row_tile, 1), lambda i: (i, 0)),
        ),
        compiler_params=pltpu.CompilerParams(
            dimension_semantics=("parallel",),   # independent tiles -> 2 TCs on v7x
            vmem_limit_bytes=32 * 1024 * 1024,
        ),
        cost_estimate=cost,
    )(x, tgt2d)

    # Padded / invalid rows were zeroed in-kernel; mean over the real N rows.
    return jnp.sum(per_row) / jnp.float32(N)


def label_smoothing_ref(x, target, smoothing=0.0):
    confidence = 1.0 - smoothing
    logprobs = jax.nn.log_softmax(x.astype(jnp.float32), axis=-1)
    nll = -jnp.take_along_axis(logprobs, target[:, None].astype(jnp.int32),
                               axis=-1)[:, 0]
    smooth = -jnp.mean(logprobs, axis=-1)
    return jnp.mean(confidence * nll + smoothing * smooth)


if __name__ == "__main__":
    key = jax.random.PRNGKey(0)
    kx, kt = jax.random.split(key)
    smoothing = 0.1

    # Small shapes consistent with the module: 16 samples, 32 classes.
    N, C = 16, 32
    x = jax.random.normal(kx, (N, C), dtype=jnp.float32)
    target = jax.random.randint(kt, (N,), 0, C, dtype=jnp.int32)

    loss = jax.block_until_ready(label_smoothing_loss(x, target, smoothing=smoothing))
    ref = label_smoothing_ref(x, target, smoothing=smoothing)
    assert jnp.allclose(loss, ref, rtol=1e-5, atol=1e-5), (loss, ref)

    # Shape where N does not divide the row tile (exercises the masked tail).
    N2, C2 = 37, 40
    x2 = jax.random.normal(kx, (N2, C2), dtype=jnp.float32)
    t2 = jax.random.randint(kt, (N2,), 0, C2, dtype=jnp.int32)
    loss2 = jax.block_until_ready(
        label_smoothing_loss(x2, t2, smoothing=smoothing, row_tile=16))
    ref2 = label_smoothing_ref(x2, t2, smoothing=smoothing)
    assert jnp.allclose(loss2, ref2, rtol=1e-5, atol=1e-5), (loss2, ref2)

    # bf16 logits (in-kernel upcast path; row tile aligned to 16 sublanes).
    N3, C3 = 200, 64
    x3 = jax.random.normal(kx, (N3, C3), dtype=jnp.float32).astype(jnp.bfloat16)
    t3 = jax.random.randint(kt, (N3,), 0, C3, dtype=jnp.int32)
    loss3 = jax.block_until_ready(label_smoothing_loss(x3, t3, smoothing=smoothing))
    ref3 = label_smoothing_ref(x3, t3, smoothing=smoothing)
    assert jnp.allclose(loss3, ref3, rtol=1e-4, atol=1e-4), (loss3, ref3)

    print("KERNEL_OK")
</pallas_src>

<mosaic_0001>
module attributes {stable_mosaic.version = 11 : i64} {
  func.func @_label_smoothing_kernel(%arg0: i32, %arg1: memref<8x32xf32, #tpu.memory_space<vmem>>, %arg2: memref<8x1xi32, #tpu.memory_space<vmem>>, %arg3: memref<8x1xf32, #tpu.memory_space<vmem>>) attributes {dimension_semantics = [#tpu.dimension_semantics<parallel>], iteration_bounds = array<i64: 2>, scalar_prefetch = 0 : i64, scratch_operands = 0 : i64, tpu.core_type = #tpu.core_type<tc>, window_params = [{transform_indices = @transform_0, window_bounds = array<i64: 8, 32>}, {transform_indices = @transform_1, window_bounds = array<i64: 8, 1>}, {transform_indices = @transform_2, window_bounds = array<i64: 8, 1>}]} {
    %c0 = arith.constant 0 : index
    %c0_0 = arith.constant 0 : index
    %0 = vector.load %arg1[%c0, %c0_0] : memref<8x32xf32, #tpu.memory_space<vmem>>, vector<8x32xf32>
    %cst = arith.constant dense<0xFF800000> : vector<8xf32>
    %1 = vector.multi_reduction <maximumf>, %0, %cst [1] : vector<8x32xf32> to vector<8xf32>
    %2 = vector.shape_cast %1 : vector<8xf32> to vector<8x1xf32>
    %3 = vector.broadcast %2 : vector<8x1xf32> to vector<8x32xf32>
    %4 = arith.subf %0, %3 : vector<8x32xf32>
    %5 = math.exp %4 : vector<8x32xf32>
    %cst_1 = arith.constant dense<0.000000e+00> : vector<8xf32>
    %6 = vector.multi_reduction <add>, %5, %cst_1 [1] : vector<8x32xf32> to vector<8xf32>
    %7 = vector.shape_cast %6 : vector<8xf32> to vector<8x1xf32>
    %8 = math.log %7 : vector<8x1xf32>
    %c0_2 = arith.constant 0 : index
    %c0_3 = arith.constant 0 : index
    %9 = vector.load %arg2[%c0_2, %c0_3] : memref<8x1xi32, #tpu.memory_space<vmem>>, vector<8x1xi32>
    %10 = tpu.iota {dimensions = array<i32: 1>} : vector<1x32xi32>
    %11 = vector.broadcast %10 : vector<1x32xi32> to vector<8x32xi32>
    %12 = vector.broadcast %9 : vector<8x1xi32> to vector<8x32xi32>
    %13 = arith.cmpi eq, %11, %12 : vector<8x32xi32>
    %cst_4 = arith.constant 0.903124988 : f32
    %cst_5 = arith.constant 3.125000e-03 : f32
    %14 = vector.broadcast %cst_4 : f32 to vector<8x32xf32>
    %15 = vector.broadcast %cst_5 : f32 to vector<8x32xf32>
    %16 = arith.select %13, %14, %15 : vector<8x32xi1>, vector<8x32xf32>
    %17 = arith.mulf %4, %16 : vector<8x32xf32>
    %cst_6 = arith.constant dense<0.000000e+00> : vector<8xf32>
    %18 = vector.multi_reduction <add>, %17, %cst_6 [1] : vector<8x32xf32> to vector<8xf32>
    %19 = vector.shape_cast %18 : vector<8xf32> to vector<8x1xf32>
    %20 = arith.subf %8, %19 : vector<8x1xf32>
    %c8_i32 = arith.constant 8 : i32
    %21 = arith.muli %arg0, %c8_i32 : i32
    %22 = tpu.iota {dimensions = array<i32: 0>} : vector<8x1xi32>
    %23 = vector.broadcast %21 : i32 to vector<8x1xi32>
    %24 = arith.addi %23, %22 : vector<8x1xi32>
    %c16_i32 = arith.constant 16 : i32
    %25 = vector.broadcast %c16_i32 : i32 to vector<8x1xi32>
    %26 = arith.cmpi slt, %24, %25 : vector<8x1xi32>
    %cst_7 = arith.constant 0.000000e+00 : f32
    %27 = vector.broadcast %cst_7 : f32 to vector<8x1xf32>
    %28 = arith.select %26, %20, %27 : vector<8x1xi1>, vector<8x1xf32>
    %c0_8 = arith.constant 0 : index
    %c0_9 = arith.constant 0 : index
    %29 = vector.load %arg3[%c0_8, %c0_9] : memref<8x1xf32, #tpu.memory_space<vmem>>, vector<8x1xf32>
    tpu.vector_store %arg3[%c0_8, %c0_9], %28 {strides = array<i32>} : memref<8x1xf32, #tpu.memory_space<vmem>>, vector<8x1xf32>,
    return
  }
  func.func @transform_0(%arg0: i32) -> (i32, i32) {
    %c0_i32 = arith.constant 0 : i32
    %c0_i32_0 = arith.constant 0 : i32
    return %arg0, %c0_i32 : i32, i32
  }
  func.func @transform_1(%arg0: i32) -> (i32, i32) {
    %c0_i32 = arith.constant 0 : i32
    %c0_i32_0 = arith.constant 0 : i32
    return %arg0, %c0_i32 : i32, i32
  }
  func.func @transform_2(%arg0: i32) -> (i32, i32) {
    %c0_i32 = arith.constant 0 : i32
    %c0_i32_0 = arith.constant 0 : i32
    return %arg0, %c0_i32 : i32, i32
  }
}

</mosaic_0001>

<llo_original>
// kernel: tpu_custom_call.1
$region0: #{tpu_custom_call.1}
  #allocation0 [shape = 'u32[]', space=smem, size = 0x4, offset = 0x4, fixed_abs, tag = 'smem constant byte address 0x4 - core index']
  #allocation1 [shape = 'u32[144,128]{1,0:T(1,128)}', space=vmem, size = 0x12000, scoped, tag = 'internal scratch']
  %s0 = inlined_call_operand.vmem [shape: f32[16,32], index: 0, kind: input, shape index: {}]
  %s1 = inlined_call_operand.vmem [shape: s32[16,1], index: 1, kind: input, shape index: {}]
  %s2 = inlined_call_operand.vmem [shape: f32[16,1], index: 2, kind: output, shape index: {}]
  %s3 = sld [smem:[#allocation0]]
  $region41: #{tpu_custom_call.1} parent=0
    _
  %s5 = ssub.s32 1, %s3
  %s6 = scalar_select 0, %s5, %s3
  loop: start=0, step=1, limit=4
  $region2: #{tpu_custom_call.1} parent=0 // loop_pre_header
    _
  $region3: #{tpu_custom_call.1} parent=0 // loop_header
    %s8 = sphi 0, %s12
    %p9 = scmp.ge.s32.totalorder %s8, 4
    %s18 = sphi 0, %s20
    %s21 = sphi 0, %s18
    %s22 = sphi 0, %s21
    %s38 = sphi 0, %s22
    %s44 = sphi 0, %s46
    %s47 = sphi 0, %s44
    %s48 = sphi 0, %s47
    %s64 = sphi 0, %s48
    %s70 = sphi 0, %s72
    %s73 = sphi 0, %s70
    %s74 = sphi 0, %s73
    %s90 = sphi 0, %s74
  $region4: #{tpu_custom_call.1} parent=0 // loop_header_branch
    %11 = sbr.rel (%p9) target = $region8
  $region5: #{tpu_custom_call.1} parent=0 // loop_body
    %s13 = ssub.s32 %s8, 1
    %s14 = ssub.s32 %s8, 2
    %s15 = sadd.s32 %s8, 1
    %s16 = ssub.s32 %s8, %s15
    %p17 = scmp.eq.s32.totalorder %s16, 0
    %s19 = sadd.s32 %s18, 1
    %s20 = scalar_select %p17, %s18, %s19
    %p23 = pneg %p17
    %p24 = scmp.eq.s32.totalorder %s8, 1
    %p25 = por %p23, %p24
    %p26 = scmp.ne.s32.totalorder %s18, %s21
    %p27 = scmp.eq.s32.totalorder %s8, 0
    %p28 = por %p26, %p27
    %p29 = scmp.ne.s32.totalorder %s18, %s21
    %p30 = scmp.eq.s32.totalorder %s13, 1
    %p31 = por %p29, %p30
    %p32 = scmp.ne.s32.totalorder %s21, %s22
    %p33 = scmp.eq.s32.totalorder %s13, 0
    %p34 = por %p32, %p33
    %p35 = scmp.ne.s32.totalorder %s21, %s22
    %p36 = scmp.eq.s32.totalorder %s14, 1
    %p37 = por %p35, %p36
    %p39 = scmp.ne.s32.totalorder %s22, %s38
    %p40 = scmp.eq.s32.totalorder %s14, 0
    %p41 = por %p39, %p40
    %s42 = ssub.s32 %s8, %s15
    %p43 = scmp.eq.s32.totalorder %s42, 0
    %s45 = sadd.s32 %s44, 1
    %s46 = scalar_select %p43, %s44, %s45
    %p49 = pneg %p43
    %p50 = scmp.eq.s32.totalorder %s8, 1
    %p51 = por %p49, %p50
    %p52 = scmp.ne.s32.totalorder %s44, %s47
    %p53 = scmp.eq.s32.totalorder %s8, 0
    %p54 = por %p52, %p53
    %p55 = scmp.ne.s32.totalorder %s44, %s47
    %p56 = scmp.eq.s32.totalorder %s13, 1
    %p57 = por %p55, %p56
    %p58 = scmp.ne.s32.totalorder %s47, %s48
    %p59 = scmp.eq.s32.totalorder %s13, 0
    %p60 = por %p58, %p59
    %p61 = scmp.ne.s32.totalorder %s47, %s48
    %p62 = scmp.eq.s32.totalorder %s14, 1
    %p63 = por %p61, %p62
    %p65 = scmp.ne.s32.totalorder %s48, %s64
    %p66 = scmp.eq.s32.totalorder %s14, 0
    %p67 = por %p65, %p66
    %s68 = ssub.s32 %s8, %s15
    %p69 = scmp.eq.s32.totalorder %s68, 0
    %s71 = sadd.s32 %s70, 1
    %s72 = scalar_select %p69, %s70, %s71
    %p75 = pneg %p69
    %p76 = scmp.eq.s32.totalorder %s8, 1
    %p77 = por %p75, %p76
    %p78 = scmp.ne.s32.totalorder %s70, %s73
    %p79 = scmp.eq.s32.totalorder %s8, 0
    %p80 = por %p78, %p79
    %p81 = scmp.ne.s32.totalorder %s70, %s73
    %p82 = scmp.eq.s32.totalorder %s13, 1
    %p83 = por %p81, %p82
    %p84 = scmp.ne.s32.totalorder %s73, %s74
    %p85 = scmp.eq.s32.totalorder %s13, 0
    %p86 = por %p84, %p85
    %p87 = scmp.ne.s32.totalorder %s73, %s74
    %p88 = scmp.eq.s32.totalorder %s14, 1
    %p89 = por %p87, %p88
    %p91 = scmp.ne.s32.totalorder %s74, %s90
    %p92 = scmp.eq.s32.totalorder %s14, 0
    %p93 = por %p91, %p92
    %p94 = scmp.le.s32.totalorder 1, %s8
    %p95 = scmp.lt.s32.totalorder %s8, 3
    %p96 = pnand %p94, %p95
    %p97 = pneg %p96
    // Predicated region
    $region9: #{tpu_custom_call.1} parent=5 // pred_check
      _
    $region10: #{tpu_custom_call.1} parent=5 // pred_check_branch
      %99 = sbr.rel (%p96) target = $region12
    $region11: #{tpu_custom_call.1} parent=5 // pred_region
      %s100 = ssub.s32 %s8, 1
    $region12: #{tpu_custom_call.1} parent=5 // pred_fallthru
      _
    %p101 = scmp.lt.s32.totalorder %s8, 2
    // Predicated region
    $region13: #{tpu_custom_call.1} parent=5 // pred_check
      %p102 = pneg %p101
    $region14: #{tpu_custom_call.1} parent=5 // pred_check_branch
      %104 = sbr.rel (%p102) target = $region16
    $region15: #{tpu_custom_call.1} parent=5 // pred_region
      // Predicated region
      $region17: #{tpu_custom_call.1} parent=15 // pred_check
        %p105 = pneg %p28
      $region18: #{tpu_custom_call.1} parent=15 // pred_check_branch
        %107 = sbr.rel (%p105) target = $region20
      $region19: #{tpu_custom_call.1} parent=15 // pred_region
        %p108 = scmp.lt.s32.totalorder %s8, 1
        %s109 = scalar_select %p108, %s8, 1
        %s110 = smul.addr %s109, 8
        %s111 = scalar_lea.vmem %s0, %s110
      $region20: #{tpu_custom_call.1} parent=15 // pred_fallthru
        _
      // Predicated region
      $region21: #{tpu_custom_call.1} parent=15 // pred_check
        %p112 = pneg %p54
      $region22: #{tpu_custom_call.1} parent=15 // pred_check_branch
        %114 = sbr.rel (%p112) target = $region24
      $region23: #{tpu_custom_call.1} parent=15 // pred_region
        %p115 = scmp.lt.s32.totalorder %s8, 1
        %s116 = scalar_select %p115, %s8, 1
        %s117 = smul.addr %s116, 8
        %s118 = scalar_lea.vmem %s1, %s117
      $region24: #{tpu_custom_call.1} parent=15 // pred_fallthru
        _
    $region16: #{tpu_custom_call.1} parent=5 // pred_fallthru
      _
    %p119 = scmp.le.s32.totalorder 1, %s8
    %p120 = scmp.lt.s32.totalorder %s8, 3
    %p121 = pnand %p119, %p120
    %p122 = pneg %p121
    // Predicated region
    $region25: #{tpu_custom_call.1} parent=5 // pred_check
      _
    $region26: #{tpu_custom_call.1} parent=5 // pred_check_branch
      %124 = sbr.rel (%p121) target = $region28
    $region27: #{tpu_custom_call.1} parent=5 // pred_region
      %s125 = ssub.s32 %s8, 1
      %p126 = scmp.lt.s32.totalorder %s13, 1
      %s127 = scalar_select %p126, %s13, 1
      %s128 = smul.addr %s127, 8
      %s129 = scalar_lea.vmem %s0, %s128
      %p130 = pneg %p34
      %p131 = pneg %p31
      %p132 = scmp.lt.s32.totalorder %s13, 1
      %s133 = scalar_select %p132, %s13, 1
      %s134 = smul.addr %s133, 8
      %s135 = scalar_lea.vmem %s1, %s134
      %p136 = pneg %p60
      %p137 = pneg %p57
      %p138 = pneg %p86
      %p139 = pneg %p83
      %p140 = scmp.lt.s32.totalorder %s13, 1
      %s141 = scalar_select %p140, %s13, 1
      %s142 = smul.addr %s141, 8
      %s143 = scalar_lea.vmem %s2, %s142
      %p144 = scmp.lt.s32.totalorder %s13, 1
      %s145 = scalar_select %p144, %s13, 1
      %s146 = smul.addr %s145, 8
      %s147 = scalar_lea.vmem %s0, %s146
      %p148 = scmp.lt.s32.totalorder %s13, 1
      %s149 = scalar_select %p148, %s13, 1
      %s150 = smul.addr %s149, 8
      %s151 = scalar_lea.vmem %s1, %s150
      %p152 = scmp.lt.s32.totalorder %s13, 1
      %s153 = scalar_select %p152, %s13, 1
      %s154 = smul.addr %s153, 8
      %s155 = scalar_lea.vmem %s2, %s154
      %v156 = vld [vmem:[%s147] sm:$0xff]
      %vm157 = vcmask 261120
      %v158 = vsel %vm157, %v156, -inf
      %159 = vmax.xlane.f32.xlu0 %v158
      %v160 = vpop.xlane.xlu0 %159
      %v161 = vsub.f32 %v156, %v160
      %v162 = vmul.f32 %v161, 1.442695
      %v163 = vpow.pop %v162
      %v164 = vsel %vm157, %v163, 0.0
      %165 = vadd.xlane.f32.xlu0 %v164
      %v166 = vpop.xlane.xlu0 %165
      %v167 = vlog2.pop %v166
      %v168 = vmul.f32 %v167, 0.6931472
      %v169 = vld [vmem:[%s151] sm:$0xff]
      %v170 = vlaneseq
      %v171 = vand.u32 %v170, 127
      %172 = vset.pattern.permute.xlu0 0
      %173 = vperm.xlu0 %172, %v169
      %v174 = vpop.permute.xlu0 %173
      %vm175 = vcmp.eq.s32.totalorder %v171, %v174
      %v176 = vsel %vm175, 0.903125, 0.003125
      %v177 = vmul.f32 %v161, %v176
      %v178 = vsel %vm157, %v177, 0.0
      %179 = vadd.xlane.f32.xlu0 %v178
      %v180 = vpop.xlane.xlu0 %179
      %v181 = vsub.f32 %v168, %v180
      %s182 = smul.u32 %s13, 8
      %v183 = vlaneseq
      %v184 = vshrl.u32 %v183, 7
      %v185 = vstv %s182
      %v186 = vadd.s32 %v185, %v184
      %vm187 = vcmp.lt.s32.totalorder %v186, 16
      %v188 = vsel %vm187, %v181, 0.0
      %vm189 = vcmask 7168
      %190 = vst.msk [vmem:[%s155] sm:$0xff] %vm189, %v188
      %p191 = scmp.lt.s32.totalorder %s13, 1
      %s192 = scalar_select %p191, %s13, 1
      %s193 = smul.addr %s192, 8
      %s194 = scalar_lea.vmem %s2, %s193
      // Predicated region
      $region29: #{tpu_custom_call.1} parent=27 // pred_check
        %p195 = pneg %p83
      $region30: #{tpu_custom_call.1} parent=27 // pred_check_branch
        %197 = sbr.rel (%p195) target = $region32
      $region31: #{tpu_custom_call.1} parent=27 // pred_region
        _
      $region32: #{tpu_custom_call.1} parent=27 // pred_fallthru
        _
    $region28: #{tpu_custom_call.1} parent=5 // pred_fallthru
      _
    %p198 = scmp.le.s32.totalorder 2, %s8
    // Predicated region
    $region33: #{tpu_custom_call.1} parent=5 // pred_check
      %p199 = pneg %p198
    $region34: #{tpu_custom_call.1} parent=5 // pred_check_branch
      %201 = sbr.rel (%p199) target = $region36
    $region35: #{tpu_custom_call.1} parent=5 // pred_region
      %s202 = ssub.s32 %s8, 2
      // Predicated region
      $region37: #{tpu_custom_call.1} parent=35 // pred_check
        %p203 = pneg %p89
      $region38: #{tpu_custom_call.1} parent=35 // pred_check_branch
        %205 = sbr.rel (%p203) target = $region40
      $region39: #{tpu_custom_call.1} parent=35 // pred_region
        %p206 = scmp.lt.s32.totalorder %s14, 1
        %s207 = scalar_select %p206, %s14, 1
        %s208 = smul.addr %s207, 8
        %s209 = scalar_lea.vmem %s2, %s208
      $region40: #{tpu_custom_call.1} parent=35 // pred_fallthru
        _
    $region36: #{tpu_custom_call.1} parent=5 // pred_fallthru
      _
  $region6: #{tpu_custom_call.1} parent=0 // loop_footer
    %s12 = sadd.s32 1, %s8
  $region7: #{tpu_custom_call.1} parent=0 // loop_footer_branch
    %7 = sbr.rel target = $region3
  $region8: #{tpu_custom_call.1} parent=0 // loop_exit
    _

</llo_original>
